<compile_context>
chip_gen: v5e
topology: v5e:2x2
jax: 0.10.0
libtpu: 0.0.40
codegen_flags: <defaults>
</compile_context>

<pallas_src>
import jax
import jax.numpy as jnp
from jax.experimental import pallas as pl
from jax.experimental.pallas import tpu as pltpu


# ---------------------------------------------------------------------------
# Fused per-level kernel
# ---------------------------------------------------------------------------
def make_level_kernel(W, has_up):
    """Fused [1x1 lateral conv (+ upsample-add)] + 3x3 conv, one image / step.

    W is the spatial width of this level (static).  The 3x3 conv is computed
    on a flattened (H*W, C) layout: the lateral is written into a VMEM scratch
    padded with W+1 zero "pixels" on each side, so every conv tap (dy, dx) is
    a contiguous row-shifted window of the scratch.  Left/right column wrap
    contamination is zeroed with an iota mask.  The 9 windows are concatenated
    on the lane axis into an (H*W, 9*C) im2col matrix and hit the MXU once.
    """
    TAPS = [(dy, dx) for dy in (-1, 0, 1) for dx in (-1, 0, 1)]

    def kernel(*refs):
        if has_up:
            (x_ref, up_ref, u_ref, latw_ref, latb_ref, fpnw_ref, fpnb_ref,
             lat_ref, out_ref, pad_ref) = refs
        else:
            (x_ref, latw_ref, latb_ref, fpnw_ref, fpnb_ref,
             lat_ref, out_ref, pad_ref) = refs

        HW = lat_ref.shape[1]
        Cout = lat_ref.shape[2]

        # ---- lateral 1x1 conv: single flat GEMM -------------------------
        lat = jnp.dot(x_ref[0], latw_ref[...],
                      preferred_element_type=jnp.float32)
        lat = lat + latb_ref[...]

        # ---- top-down nearest-upsample add, as a 0/1-matrix matmul ------
        if has_up:
            lat = lat + jnp.dot(u_ref[...], up_ref[0],
                                preferred_element_type=jnp.float32)

        lat_ref[0] = lat.astype(lat_ref.dtype)

        # ---- 3x3 conv (pad=1) via flat row-shift im2col + one matmul ----
        pad = W + 1  # zero "pixels" each side == one zero row + one element
        pad_ref[pl.ds(0, pad), :] = jnp.zeros((pad, Cout), jnp.float32)
        pad_ref[pl.ds(pad + HW, pad), :] = jnp.zeros((pad, Cout), jnp.float32)
        pad_ref[pl.ds(pad, HW), :] = lat

        col = jax.lax.broadcasted_iota(jnp.int32, (HW, 1), 0) % W
        not_left = col != 0
        not_right = col != (W - 1)

        pieces = []
        for dy, dx in TAPS:
            s = pad + dy * W + dx                   # static start offset >= 0
            xs = pad_ref[pl.ds(s, HW), :]           # (HW, Cout)
            if dx == -1:                            # left neighbor of col 0 is zero-pad
                xs = jnp.where(not_left, xs, 0.0)
            elif dx == 1:                           # right neighbor of col W-1 is zero-pad
                xs = jnp.where(not_right, xs, 0.0)
            pieces.append(xs)
        cols = jnp.concatenate(pieces, axis=1)      # (HW, 9*Cout) im2col

        out = jnp.dot(cols, fpnw_ref[...], preferred_element_type=jnp.float32)
        out = out + fpnb_ref[...]
        out_ref[0] = out.astype(out_ref.dtype)

    return kernel


# ---------------------------------------------------------------------------
# Wrapper
# ---------------------------------------------------------------------------
def _nearest_upsample_matrix(H, W, h, w, dtype):
    """0/1 matrix U (H*W, h*w): U @ small_flat == nearest-resize(small) flat.

    Uses src = floor(dst * in / out), matching F.interpolate(mode='nearest'),
    so non-integer ratios (odd spatial dims) are also handled.
    """
    ys = (jnp.arange(H) * h) // H
    xs = (jnp.arange(W) * w) // W
    src = (ys[:, None] * w + xs[None, :]).reshape(H * W)
    return (src[:, None] == jnp.arange(h * w)[None, :]).astype(dtype)


def _run_level(x_flat, up_flat, U, latw, latb, fpnw, fpnb, Wd):
    """One fused pallas_call for one pyramid level.  Returns (lateral, out)."""
    N, HW, Cin = x_flat.shape
    Cout = latw.shape[-1]
    has_up = up_flat is not None

    args = [x_flat]
    in_specs = [pl.BlockSpec((1, HW, Cin), lambda n: (n, 0, 0))]
    if has_up:
        hw = up_flat.shape[1]
        args += [up_flat, U]
        in_specs += [pl.BlockSpec((1, hw, Cout), lambda n: (n, 0, 0)),
                     pl.BlockSpec((HW, hw), lambda n: (0, 0))]
    args += [latw, latb, fpnw, fpnb]
    in_specs += [pl.BlockSpec((Cin, Cout), lambda n: (0, 0)),
                 pl.BlockSpec((1, Cout), lambda n: (0, 0)),
                 pl.BlockSpec((9 * Cout, Cout), lambda n: (0, 0)),
                 pl.BlockSpec((1, Cout), lambda n: (0, 0))]

    lat, out = pl.pallas_call(
        make_level_kernel(Wd, has_up),
        out_shape=(jax.ShapeDtypeStruct((N, HW, Cout), x_flat.dtype),
                   jax.ShapeDtypeStruct((N, HW, Cout), x_flat.dtype)),
        grid=(N,),
        in_specs=in_specs,
        out_specs=(pl.BlockSpec((1, HW, Cout), lambda n: (n, 0, 0)),
                   pl.BlockSpec((1, HW, Cout), lambda n: (n, 0, 0))),
        scratch_shapes=[pltpu.VMEM((HW + 2 * (Wd + 1), Cout), jnp.float32)],
        compiler_params=pltpu.CompilerParams(
            dimension_semantics=("parallel",)),
    )(*args)
    return lat, out


def fpn_forward(inputs_nchw, params):
    """Pallas FPN forward.  inputs_nchw: list of (N, Cin_i, H_i, W_i)."""
    # layout glue: NCHW -> channels-last, flattened spatial (N, H*W, C).
    xs, shapes = [], []
    for x in inputs_nchw:
        N, C, H, Wd = x.shape
        shapes.append((N, H, Wd, C))
        xs.append(jnp.transpose(x, (0, 2, 3, 1)).reshape(N, H * Wd, C))

    L = len(xs)
    out_c = params["lat_w"][0].shape[-1]

    laterals = [None] * L
    outs = [None] * L

    # top-down: each fused call emits (added lateral, 3x3 fpn output); the
    # lateral feeds the level below (preserving the cumulative add chain).
    for i in range(L - 1, -1, -1):
        N, H, Wd, Cin = shapes[i]
        latw = params["lat_w"][i].reshape(Cin, out_c)
        latb = params["lat_b"][i].reshape(1, out_c)
        fpnw = params["fpn_w"][i].reshape(9 * out_c, out_c)
        fpnb = params["fpn_b"][i].reshape(1, out_c)

        if i < L - 1:
            _, Hh, Wh, _ = shapes[i + 1]
            # TODO(synk): the dense (H*W, h*w) interpolation matrix is fine at
            # these sizes but O(H*W*h*w); very large production levels would
            # need a tiled/strided upsample path instead.
            U = _nearest_upsample_matrix(H, Wd, Hh, Wh, xs[i].dtype)
            lat_i, out_i = _run_level(xs[i], laterals[i + 1], U,
                                      latw, latb, fpnw, fpnb, Wd)
        else:
            lat_i, out_i = _run_level(xs[i], None, None,
                                      latw, latb, fpnw, fpnb, Wd)
        laterals[i] = lat_i
        outs[i] = out_i

    # TODO(synk): extra-level paths (max_pool2d stride-2 / add_extra_convs) are
    # not exercised because num_outs == len(in_channels) here.
    results = []
    for i in range(L):
        N, H, Wd, _ = shapes[i]
        o = outs[i].reshape(N, H, Wd, out_c)
        results.append(jnp.transpose(o, (0, 3, 1, 2)))  # back to NCHW
    return tuple(results)


# ---------------------------------------------------------------------------
# Pure-JAX reference (for correctness check)
# ---------------------------------------------------------------------------
def conv_ref(x_nhwc, w, b, K, pad):
    w4 = w.reshape(K, K, w.shape[1], w.shape[2])  # HWIO
    y = jax.lax.conv_general_dilated(
        x_nhwc, w4, window_strides=(1, 1), padding=[(pad, pad), (pad, pad)],
        dimension_numbers=("NHWC", "HWIO", "NHWC"))
    return y + b


def fpn_forward_ref(inputs_nchw, params):
    xs = [jnp.transpose(x, (0, 2, 3, 1)) for x in inputs_nchw]
    laterals = [conv_ref(xs[i], params["lat_w"][i], params["lat_b"][i], 1, 0)
                for i in range(len(xs))]
    for i in range(len(laterals) - 1, 0, -1):
        up = jnp.repeat(jnp.repeat(laterals[i], 2, axis=1), 2, axis=2)
        laterals[i - 1] = laterals[i - 1] + up
    outs = [conv_ref(laterals[i], params["fpn_w"][i], params["fpn_b"][i], 3, 1)
            for i in range(len(laterals))]
    return tuple(jnp.transpose(o, (0, 3, 1, 2)) for o in outs)


# ---------------------------------------------------------------------------
if __name__ == "__main__":
    # FPN(in_channels=[4, 8, 16], out_channels=8, num_outs=3)
    in_channels = [4, 8, 16]
    out_channels = 8
    spatials = [16, 8, 4]
    N = 2

    key = jax.random.PRNGKey(0)
    keys = jax.random.split(key, 5 * len(in_channels))

    inputs = []
    params = {"lat_w": [], "lat_b": [], "fpn_w": [], "fpn_b": []}
    k = 0
    for c, s in zip(in_channels, spatials):
        inputs.append(jax.random.normal(keys[k], (N, c, s, s), jnp.float32))
        k += 1
        params["lat_w"].append(
            0.1 * jax.random.normal(keys[k], (1, c, out_channels), jnp.float32))
        k += 1
        params["lat_b"].append(
            0.1 * jax.random.normal(keys[k], (out_channels,), jnp.float32))
        k += 1
        params["fpn_w"].append(
            0.1 * jax.random.normal(keys[k], (9, out_channels, out_channels),
                                    jnp.float32))
        k += 1
        params["fpn_b"].append(
            0.1 * jax.random.normal(keys[k], (out_channels,), jnp.float32))
        k += 1

    outs = jax.block_until_ready(fpn_forward(inputs, params))
    refs = jax.block_until_ready(fpn_forward_ref(inputs, params))

    for o, r in zip(outs, refs):
        assert o.shape == r.shape, (o.shape, r.shape)
        assert jnp.allclose(o, r, atol=1e-4, rtol=1e-4), \
            float(jnp.max(jnp.abs(o - r)))

    print("KERNEL_OK")
</pallas_src>

<mosaic_0001>
module attributes {stable_mosaic.version = 11 : i64} {
  func.func @kernel(%arg0: i32, %arg1: memref<1x16x16xf32, #tpu.memory_space<vmem>>, %arg2: memref<16x8xf32, #tpu.memory_space<vmem>>, %arg3: memref<1x8xf32, #tpu.memory_space<vmem>>, %arg4: memref<72x8xf32, #tpu.memory_space<vmem>>, %arg5: memref<1x8xf32, #tpu.memory_space<vmem>>, %arg6: memref<1x16x8xf32, #tpu.memory_space<vmem>>, %arg7: memref<1x16x8xf32, #tpu.memory_space<vmem>>, %arg8: memref<26x8xf32, #tpu.memory_space<vmem>>) attributes {dimension_semantics = [#tpu.dimension_semantics<parallel>], iteration_bounds = array<i64: 2>, scalar_prefetch = 0 : i64, scratch_operands = 1 : i64, tpu.core_type = #tpu.core_type<tc>, window_params = [{transform_indices = @transform_0, window_bounds = array<i64: 1, 16, 16>}, {pipeline_mode = #tpu.pipeline_mode<synchronous>, transform_indices = @transform_1, window_bounds = array<i64: 16, 8>}, {pipeline_mode = #tpu.pipeline_mode<synchronous>, transform_indices = @transform_2, window_bounds = array<i64: 1, 8>}, {pipeline_mode = #tpu.pipeline_mode<synchronous>, transform_indices = @transform_3, window_bounds = array<i64: 72, 8>}, {pipeline_mode = #tpu.pipeline_mode<synchronous>, transform_indices = @transform_4, window_bounds = array<i64: 1, 8>}, {transform_indices = @transform_5, window_bounds = array<i64: 1, 16, 8>}, {transform_indices = @transform_6, window_bounds = array<i64: 1, 16, 8>}]} {
    %c0 = arith.constant 0 : index
    %c0_0 = arith.constant 0 : index
    %c0_1 = arith.constant 0 : index
    %0 = vector.load %arg1[%c0, %c0_0, %c0_1] : memref<1x16x16xf32, #tpu.memory_space<vmem>>, vector<1x16x16xf32>
    %1 = vector.shape_cast %0 : vector<1x16x16xf32> to vector<16x16xf32>
    %c0_2 = arith.constant 0 : index
    %c0_3 = arith.constant 0 : index
    %2 = vector.load %arg2[%c0_2, %c0_3] : memref<16x8xf32, #tpu.memory_space<vmem>>, vector<16x8xf32>
    %cst = arith.constant dense<0.000000e+00> : vector<16x8xf32>
    %3 = tpu.matmul %1, %2, %cst {dimension_numbers = #tpu.dot_dimension_numbers<[1], [0], [0], [1], [0, 0, 1, 1], [], []>} : vector<16x16xf32>, vector<16x8xf32>, vector<16x8xf32> -> vector<16x8xf32>
    %c0_4 = arith.constant 0 : index
    %c0_5 = arith.constant 0 : index
    %4 = vector.load %arg3[%c0_4, %c0_5] : memref<1x8xf32, #tpu.memory_space<vmem>>, vector<1x8xf32>
    %5 = vector.broadcast %4 : vector<1x8xf32> to vector<16x8xf32>
    %6 = arith.addf %3, %5 : vector<16x8xf32>
    %c0_6 = arith.constant 0 : index
    %c0_7 = arith.constant 0 : index
    %c0_8 = arith.constant 0 : index
    %7 = vector.load %arg6[%c0_6, %c0_7, %c0_8] : memref<1x16x8xf32, #tpu.memory_space<vmem>>, vector<1x16x8xf32>
    %8 = vector.shape_cast %7 : vector<1x16x8xf32> to vector<16x8xf32>
    %9 = vector.shape_cast %6 : vector<16x8xf32> to vector<1x16x8xf32>
    tpu.vector_store %arg6[%c0_6, %c0_7, %c0_8], %9 {strides = array<i32>} : memref<1x16x8xf32, #tpu.memory_space<vmem>>, vector<1x16x8xf32>,
    %cst_9 = arith.constant 0.000000e+00 : f32
    %10 = vector.broadcast %cst_9 : f32 to vector<5x8xf32>
    %c0_10 = arith.constant 0 : index
    %c0_11 = arith.constant 0 : index
    %11 = vector.load %arg8[%c0_10, %c0_11] : memref<26x8xf32, #tpu.memory_space<vmem>>, vector<5x8xf32>
    tpu.vector_store %arg8[%c0_10, %c0_11], %10 {strides = array<i32>} : memref<26x8xf32, #tpu.memory_space<vmem>>, vector<5x8xf32>,
    %cst_12 = arith.constant 0.000000e+00 : f32
    %12 = vector.broadcast %cst_12 : f32 to vector<5x8xf32>
    %c21 = arith.constant 21 : index
    %c0_13 = arith.constant 0 : index
    %13 = vector.load %arg8[%c21, %c0_13] : memref<26x8xf32, #tpu.memory_space<vmem>>, vector<5x8xf32>
    tpu.vector_store %arg8[%c21, %c0_13], %12 {strides = array<i32>} : memref<26x8xf32, #tpu.memory_space<vmem>>, vector<5x8xf32>,
    %c5 = arith.constant 5 : index
    %c0_14 = arith.constant 0 : index
    %14 = vector.load %arg8[%c5, %c0_14] : memref<26x8xf32, #tpu.memory_space<vmem>>, vector<16x8xf32>
    tpu.vector_store %arg8[%c5, %c0_14], %6 {strides = array<i32>} : memref<26x8xf32, #tpu.memory_space<vmem>>, vector<16x8xf32>,
    %15 = tpu.iota {dimensions = array<i32: 0>} : vector<16x1xi32>
    %c4_i32 = arith.constant 4 : i32
    %c0_i32 = arith.constant 0 : i32
    %16 = arith.cmpi eq, %c4_i32, %c0_i32 : i32
    %c1_i32 = arith.constant 1 : i32
    %17 = arith.select %16, %c1_i32, %c4_i32 : i32
    %18 = vector.broadcast %17 : i32 to vector<16x1xi32>
    %19 = arith.remsi %15, %18 : vector<16x1xi32>
    %c0_i32_15 = arith.constant 0 : i32
    %20 = vector.broadcast %c0_i32_15 : i32 to vector<16x1xi32>
    %21 = arith.cmpi ne, %19, %20 : vector<16x1xi32>
    %c0_i32_16 = arith.constant 0 : i32
    %22 = vector.broadcast %c0_i32_16 : i32 to vector<16x1xi32>
    %23 = arith.cmpi slt, %19, %22 : vector<16x1xi32>
    %c0_i32_17 = arith.constant 0 : i32
    %24 = arith.cmpi slt, %17, %c0_i32_17 : i32
    %25 = vector.broadcast %24 : i1 to vector<16x1xi1>
    %26 = vector.broadcast %25 : vector<16x1xi1> to vector<16x1xi1>
    %27 = arith.xori %23, %26 : vector<16x1xi1>
    %28 = arith.andi %27, %21 : vector<16x1xi1>
    %29 = vector.broadcast %17 : i32 to vector<16x1xi32>
    %30 = arith.addi %19, %29 : vector<16x1xi32>
    %31 = arith.select %28, %30, %19 : vector<16x1xi1>, vector<16x1xi32>
    %c0_i32_18 = arith.constant 0 : i32
    %32 = vector.broadcast %c0_i32_18 : i32 to vector<16x1xi32>
    %33 = arith.cmpi ne, %31, %32 : vector<16x1xi32>
    %c3_i32 = arith.constant 3 : i32
    %34 = vector.broadcast %c3_i32 : i32 to vector<16x1xi32>
    %35 = arith.cmpi ne, %31, %34 : vector<16x1xi32>
    %c0_19 = arith.constant 0 : index
    %c0_20 = arith.constant 0 : index
    %36 = vector.load %arg8[%c0_19, %c0_20] : memref<26x8xf32, #tpu.memory_space<vmem>>, vector<16x8xf32>
    %cst_21 = arith.constant 0.000000e+00 : f32
    %37 = vector.shape_cast %33 : vector<16x1xi1> to vector<16x1xi1>
    %38 = vector.broadcast %37 : vector<16x1xi1> to vector<16x8xi1>
    %39 = vector.broadcast %cst_21 : f32 to vector<16x8xf32>
    %40 = arith.select %38, %36, %39 : vector<16x8xi1>, vector<16x8xf32>
    %c1 = arith.constant 1 : index
    %c0_22 = arith.constant 0 : index
    %41 = vector.load %arg8[%c1, %c0_22] : memref<26x8xf32, #tpu.memory_space<vmem>>, vector<16x8xf32>
    %c2 = arith.constant 2 : index
    %c0_23 = arith.constant 0 : index
    %42 = vector.load %arg8[%c2, %c0_23] : memref<26x8xf32, #tpu.memory_space<vmem>>, vector<16x8xf32>
    %cst_24 = arith.constant 0.000000e+00 : f32
    %43 = vector.shape_cast %35 : vector<16x1xi1> to vector<16x1xi1>
    %44 = vector.broadcast %43 : vector<16x1xi1> to vector<16x8xi1>
    %45 = vector.broadcast %cst_24 : f32 to vector<16x8xf32>
    %46 = arith.select %44, %42, %45 : vector<16x8xi1>, vector<16x8xf32>
    %c4 = arith.constant 4 : index
    %c0_25 = arith.constant 0 : index
    %47 = vector.load %arg8[%c4, %c0_25] : memref<26x8xf32, #tpu.memory_space<vmem>>, vector<16x8xf32>
    %cst_26 = arith.constant 0.000000e+00 : f32
    %48 = vector.shape_cast %33 : vector<16x1xi1> to vector<16x1xi1>
    %49 = vector.broadcast %48 : vector<16x1xi1> to vector<16x8xi1>
    %50 = vector.broadcast %cst_26 : f32 to vector<16x8xf32>
    %51 = arith.select %49, %47, %50 : vector<16x8xi1>, vector<16x8xf32>
    %c5_27 = arith.constant 5 : index
    %c0_28 = arith.constant 0 : index
    %52 = vector.load %arg8[%c5_27, %c0_28] : memref<26x8xf32, #tpu.memory_space<vmem>>, vector<16x8xf32>
    %c6 = arith.constant 6 : index
    %c0_29 = arith.constant 0 : index
    %53 = vector.load %arg8[%c6, %c0_29] : memref<26x8xf32, #tpu.memory_space<vmem>>, vector<16x8xf32>
    %cst_30 = arith.constant 0.000000e+00 : f32
    %54 = vector.shape_cast %35 : vector<16x1xi1> to vector<16x1xi1>
    %55 = vector.broadcast %54 : vector<16x1xi1> to vector<16x8xi1>
    %56 = vector.broadcast %cst_30 : f32 to vector<16x8xf32>
    %57 = arith.select %55, %53, %56 : vector<16x8xi1>, vector<16x8xf32>
    %c8 = arith.constant 8 : index
    %c0_31 = arith.constant 0 : index
    %58 = vector.load %arg8[%c8, %c0_31] : memref<26x8xf32, #tpu.memory_space<vmem>>, vector<16x8xf32>
    %cst_32 = arith.constant 0.000000e+00 : f32
    %59 = vector.shape_cast %33 : vector<16x1xi1> to vector<16x1xi1>
    %60 = vector.broadcast %59 : vector<16x1xi1> to vector<16x8xi1>
    %61 = vector.broadcast %cst_32 : f32 to vector<16x8xf32>
    %62 = arith.select %60, %58, %61 : vector<16x8xi1>, vector<16x8xf32>
    %c9 = arith.constant 9 : index
    %c0_33 = arith.constant 0 : index
    %63 = vector.load %arg8[%c9, %c0_33] : memref<26x8xf32, #tpu.memory_space<vmem>>, vector<16x8xf32>
    %c10 = arith.constant 10 : index
    %c0_34 = arith.constant 0 : index
    %64 = vector.load %arg8[%c10, %c0_34] : memref<26x8xf32, #tpu.memory_space<vmem>>, vector<16x8xf32>
    %cst_35 = arith.constant 0.000000e+00 : f32
    %65 = vector.shape_cast %35 : vector<16x1xi1> to vector<16x1xi1>
    %66 = vector.broadcast %65 : vector<16x1xi1> to vector<16x8xi1>
    %67 = vector.broadcast %cst_35 : f32 to vector<16x8xf32>
    %68 = arith.select %66, %64, %67 : vector<16x8xi1>, vector<16x8xf32>
    %69 = tpu.concatenate %40, %41, %46, %51, %52, %57, %62, %63, %68 in 1 : vector<16x8xf32>, vector<16x8xf32>, vector<16x8xf32>, vector<16x8xf32>, vector<16x8xf32>, vector<16x8xf32>, vector<16x8xf32>, vector<16x8xf32>, vector<16x8xf32> -> vector<16x72xf32>
    %c0_36 = arith.constant 0 : index
    %c0_37 = arith.constant 0 : index
    %70 = vector.load %arg4[%c0_36, %c0_37] : memref<72x8xf32, #tpu.memory_space<vmem>>, vector<72x8xf32>
    %cst_38 = arith.constant dense<0.000000e+00> : vector<16x8xf32>
    %71 = tpu.matmul %69, %70, %cst_38 {dimension_numbers = #tpu.dot_dimension_numbers<[1], [0], [0], [1], [0, 0, 1, 1], [], []>} : vector<16x72xf32>, vector<72x8xf32>, vector<16x8xf32> -> vector<16x8xf32>
    %c0_39 = arith.constant 0 : index
    %c0_40 = arith.constant 0 : index
    %72 = vector.load %arg5[%c0_39, %c0_40] : memref<1x8xf32, #tpu.memory_space<vmem>>, vector<1x8xf32>
    %73 = vector.broadcast %72 : vector<1x8xf32> to vector<16x8xf32>
    %74 = arith.addf %71, %73 : vector<16x8xf32>
    %c0_41 = arith.constant 0 : index
    %c0_42 = arith.constant 0 : index
    %c0_43 = arith.constant 0 : index
    %75 = vector.load %arg7[%c0_41, %c0_42, %c0_43] : memref<1x16x8xf32, #tpu.memory_space<vmem>>, vector<1x16x8xf32>
    %76 = vector.shape_cast %75 : vector<1x16x8xf32> to vector<16x8xf32>
    %77 = vector.shape_cast %74 : vector<16x8xf32> to vector<1x16x8xf32>
    tpu.vector_store %arg7[%c0_41, %c0_42, %c0_43], %77 {strides = array<i32>} : memref<1x16x8xf32, #tpu.memory_space<vmem>>, vector<1x16x8xf32>,
    return
  }
  func.func @transform_0(%arg0: i32) -> (i32, i32, i32) {
    %c0_i32 = arith.constant 0 : i32
    %c0_i32_0 = arith.constant 0 : i32
    %c0_i32_1 = arith.constant 0 : i32
    return %arg0, %c0_i32, %c0_i32_0 : i32, i32, i32
  }
  func.func @transform_1(%arg0: i32) -> (i32, i32) {
    %c0_i32 = arith.constant 0 : i32
    %c0_i32_0 = arith.constant 0 : i32
    %c0_i32_1 = arith.constant 0 : i32
    return %c0_i32, %c0_i32_0 : i32, i32
  }
  func.func @transform_2(%arg0: i32) -> (i32, i32) {
    %c0_i32 = arith.constant 0 : i32
    %c0_i32_0 = arith.constant 0 : i32
    %c0_i32_1 = arith.constant 0 : i32
    return %c0_i32, %c0_i32_0 : i32, i32
  }
  func.func @transform_3(%arg0: i32) -> (i32, i32) {
    %c0_i32 = arith.constant 0 : i32
    %c0_i32_0 = arith.constant 0 : i32
    %c0_i32_1 = arith.constant 0 : i32
    return %c0_i32, %c0_i32_0 : i32, i32
  }
  func.func @transform_4(%arg0: i32) -> (i32, i32) {
    %c0_i32 = arith.constant 0 : i32
    %c0_i32_0 = arith.constant 0 : i32
    %c0_i32_1 = arith.constant 0 : i32
    return %c0_i32, %c0_i32_0 : i32, i32
  }
  func.func @transform_5(%arg0: i32) -> (i32, i32, i32) {
    %c0_i32 = arith.constant 0 : i32
    %c0_i32_0 = arith.constant 0 : i32
    %c0_i32_1 = arith.constant 0 : i32
    return %arg0, %c0_i32, %c0_i32_0 : i32, i32, i32
  }
  func.func @transform_6(%arg0: i32) -> (i32, i32, i32) {
    %c0_i32 = arith.constant 0 : i32
    %c0_i32_0 = arith.constant 0 : i32
    %c0_i32_1 = arith.constant 0 : i32
    return %arg0, %c0_i32, %c0_i32_0 : i32, i32, i32
  }
}

</mosaic_0001>

<llo_original>
// kernel: tpu_custom_call.1
$region0: #{tpu_custom_call.1}
  #allocation0 [shape = 'u32[]', space=smem, size = 0x4, offset = 0x4, fixed_abs, tag = 'smem constant byte address 0x4 - core index']
  #allocation1 [shape = 'u32[72,128]{1,0:T(1,128)}', space=vmem, size = 0x9000, scoped, tag = 'internal scratch']
  #allocation2 [shape = 'f32[26,8]{1,0:T(8,128)}', space=vmem, size = 0x4000, scoped, tag = 'scratch operand']
  %s0 = inlined_call_operand.vmem [shape: f32[2,16,16], index: 0, kind: input, shape index: {}]
  %s1 = inlined_call_operand.vmem [shape: f32[16,8], index: 1, kind: input, shape index: {}]
  %s2 = inlined_call_operand.vmem [shape: f32[1,8], index: 2, kind: input, shape index: {}]
  %s3 = inlined_call_operand.vmem [shape: f32[72,8], index: 3, kind: input, shape index: {}]
  %s4 = inlined_call_operand.vmem [shape: f32[1,8], index: 4, kind: input, shape index: {}]
  %s5 = inlined_call_operand.vmem [shape: f32[2,16,8], index: 5, kind: output, shape index: {0}]
  %s6 = inlined_call_operand.vmem [shape: f32[2,16,8], index: 6, kind: output, shape index: {1}]
  %7 = xla_tuple %s5, %s6
  %s8 = sld [smem:[#allocation0]]
  $region61: #{tpu_custom_call.1} parent=0
    _
  %s10 = ssub.s32 1, %s8
  %s11 = scalar_select 0, %s10, %s8
  loop: start=0, step=1, limit=4
  $region2: #{tpu_custom_call.1} parent=0 // loop_pre_header
    _
  $region3: #{tpu_custom_call.1} parent=0 // loop_header
    %s13 = sphi 0, %s17
    %p14 = scmp.ge.s32.totalorder %s13, 4
    %s23 = sphi 0, %s25
    %s26 = sphi 0, %s23
    %s27 = sphi 0, %s26
    %s43 = sphi 0, %s27
    %s47 = sphi 0, %s47
    %s49 = sphi 0, %s47
    %s50 = sphi 0, %s49
    %s64 = sphi 0, %s50
    %s68 = sphi 0, %s68
    %s70 = sphi 0, %s68
    %s71 = sphi 0, %s70
    %s85 = sphi 0, %s71
    %s89 = sphi 0, %s89
    %s91 = sphi 0, %s89
    %s92 = sphi 0, %s91
    %s106 = sphi 0, %s92
    %s110 = sphi 0, %s110
    %s112 = sphi 0, %s110
    %s113 = sphi 0, %s112
    %s127 = sphi 0, %s113
    %s133 = sphi 0, %s135
    %s136 = sphi 0, %s133
    %s137 = sphi 0, %s136
    %s153 = sphi 0, %s137
    %s159 = sphi 0, %s161
    %s162 = sphi 0, %s159
    %s163 = sphi 0, %s162
    %s179 = sphi 0, %s163
  $region4: #{tpu_custom_call.1} parent=0 // loop_header_branch
    %16 = sbr.rel (%p14) target = $region8
  $region5: #{tpu_custom_call.1} parent=0 // loop_body
    %s18 = ssub.s32 %s13, 1
    %s19 = ssub.s32 %s13, 2
    %s20 = sadd.s32 %s13, 1
    %s21 = ssub.s32 %s13, %s20
    %p22 = scmp.eq.s32.totalorder %s21, 0
    %s24 = sadd.s32 %s23, 1
    %s25 = scalar_select %p22, %s23, %s24
    %p28 = pneg %p22
    %p29 = scmp.eq.s32.totalorder %s13, 1
    %p30 = por %p28, %p29
    %p31 = scmp.ne.s32.totalorder %s23, %s26
    %p32 = scmp.eq.s32.totalorder %s13, 0
    %p33 = por %p31, %p32
    %p34 = scmp.ne.s32.totalorder %s23, %s26
    %p35 = scmp.eq.s32.totalorder %s18, 1
    %p36 = por %p34, %p35
    %p37 = scmp.ne.s32.totalorder %s26, %s27
    %p38 = scmp.eq.s32.totalorder %s18, 0
    %p39 = por %p37, %p38
    %p40 = scmp.ne.s32.totalorder %s26, %s27
    %p41 = scmp.eq.s32.totalorder %s19, 1
    %p42 = por %p40, %p41
    %p44 = scmp.ne.s32.totalorder %s27, %s43
    %p45 = scmp.eq.s32.totalorder %s19, 0
    %p46 = por %p44, %p45
    %s48 = sadd.s32 %s47, 1
    %p51 = scmp.eq.s32.totalorder %s13, 1
    %p52 = scmp.ne.s32.totalorder %s47, %s49
    %p53 = scmp.eq.s32.totalorder %s13, 0
    %p54 = por %p52, %p53
    %p55 = scmp.ne.s32.totalorder %s47, %s49
    %p56 = scmp.eq.s32.totalorder %s18, 1
    %p57 = por %p55, %p56
    %p58 = scmp.ne.s32.totalorder %s49, %s50
    %p59 = scmp.eq.s32.totalorder %s18, 0
    %p60 = por %p58, %p59
    %p61 = scmp.ne.s32.totalorder %s49, %s50
    %p62 = scmp.eq.s32.totalorder %s19, 1
    %p63 = por %p61, %p62
    %p65 = scmp.ne.s32.totalorder %s50, %s64
    %p66 = scmp.eq.s32.totalorder %s19, 0
    %p67 = por %p65, %p66
    %s69 = sadd.s32 %s68, 1
    %p72 = scmp.eq.s32.totalorder %s13, 1
    %p73 = scmp.ne.s32.totalorder %s68, %s70
    %p74 = scmp.eq.s32.totalorder %s13, 0
    %p75 = por %p73, %p74
    %p76 = scmp.ne.s32.totalorder %s68, %s70
    %p77 = scmp.eq.s32.totalorder %s18, 1
    %p78 = por %p76, %p77
    %p79 = scmp.ne.s32.totalorder %s70, %s71
    %p80 = scmp.eq.s32.totalorder %s18, 0
    %p81 = por %p79, %p80
    %p82 = scmp.ne.s32.totalorder %s70, %s71
    %p83 = scmp.eq.s32.totalorder %s19, 1
    %p84 = por %p82, %p83
    %p86 = scmp.ne.s32.totalorder %s71, %s85
    %p87 = scmp.eq.s32.totalorder %s19, 0
    %p88 = por %p86, %p87
    %s90 = sadd.s32 %s89, 1
    %p93 = scmp.eq.s32.totalorder %s13, 1
    %p94 = scmp.ne.s32.totalorder %s89, %s91
    %p95 = scmp.eq.s32.totalorder %s13, 0
    %p96 = por %p94, %p95
    %p97 = scmp.ne.s32.totalorder %s89, %s91
    %p98 = scmp.eq.s32.totalorder %s18, 1
    %p99 = por %p97, %p98
    %p100 = scmp.ne.s32.totalorder %s91, %s92
    %p101 = scmp.eq.s32.totalorder %s18, 0
    %p102 = por %p100, %p101
    %p103 = scmp.ne.s32.totalorder %s91, %s92
    %p104 = scmp.eq.s32.totalorder %s19, 1
    %p105 = por %p103, %p104
    %p107 = scmp.ne.s32.totalorder %s92, %s106
    %p108 = scmp.eq.s32.totalorder %s19, 0
    %p109 = por %p107, %p108
    %s111 = sadd.s32 %s110, 1
    %p114 = scmp.eq.s32.totalorder %s13, 1
    %p115 = scmp.ne.s32.totalorder %s110, %s112
    %p116 = scmp.eq.s32.totalorder %s13, 0
    %p117 = por %p115, %p116
    %p118 = scmp.ne.s32.totalorder %s110, %s112
    %p119 = scmp.eq.s32.totalorder %s18, 1
    %p120 = por %p118, %p119
    %p121 = scmp.ne.s32.totalorder %s112, %s113
    %p122 = scmp.eq.s32.totalorder %s18, 0
    %p123 = por %p121, %p122
    %p124 = scmp.ne.s32.totalorder %s112, %s113
    %p125 = scmp.eq.s32.totalorder %s19, 1
    %p126 = por %p124, %p125
    %p128 = scmp.ne.s32.totalorder %s113, %s127
    %p129 = scmp.eq.s32.totalorder %s19, 0
    %p130 = por %p128, %p129
    %s131 = ssub.s32 %s13, %s20
    %p132 = scmp.eq.s32.totalorder %s131, 0
    %s134 = sadd.s32 %s133, 1
    %s135 = scalar_select %p132, %s133, %s134
    %p138 = pneg %p132
    %p139 = scmp.eq.s32.totalorder %s13, 1
    %p140 = por %p138, %p139
    %p141 = scmp.ne.s32.totalorder %s133, %s136
    %p142 = scmp.eq.s32.totalorder %s13, 0
    %p143 = por %p141, %p142
    %p144 = scmp.ne.s32.totalorder %s133, %s136
    %p145 = scmp.eq.s32.totalorder %s18, 1
    %p146 = por %p144, %p145
    %p147 = scmp.ne.s32.totalorder %s136, %s137
    %p148 = scmp.eq.s32.totalorder %s18, 0
    %p149 = por %p147, %p148
    %p150 = scmp.ne.s32.totalorder %s136, %s137
    %p151 = scmp.eq.s32.totalorder %s19, 1
    %p152 = por %p150, %p151
    %p154 = scmp.ne.s32.totalorder %s137, %s153
    %p155 = scmp.eq.s32.totalorder %s19, 0
    %p156 = por %p154, %p155
    %s157 = ssub.s32 %s13, %s20
    %p158 = scmp.eq.s32.totalorder %s157, 0
    %s160 = sadd.s32 %s159, 1
    %s161 = scalar_select %p158, %s159, %s160
    %p164 = pneg %p158
    %p165 = scmp.eq.s32.totalorder %s13, 1
    %p166 = por %p164, %p165
    %p167 = scmp.ne.s32.totalorder %s159, %s162
    %p168 = scmp.eq.s32.totalorder %s13, 0
    %p169 = por %p167, %p168
    %p170 = scmp.ne.s32.totalorder %s159, %s162
    %p171 = scmp.eq.s32.totalorder %s18, 1
    %p172 = por %p170, %p171
    %p173 = scmp.ne.s32.totalorder %s162, %s163
    %p174 = scmp.eq.s32.totalorder %s18, 0
    %p175 = por %p173, %p174
    %p176 = scmp.ne.s32.totalorder %s162, %s163
    %p177 = scmp.eq.s32.totalorder %s19, 1
    %p178 = por %p176, %p177
    %p180 = scmp.ne.s32.totalorder %s163, %s179
    %p181 = scmp.eq.s32.totalorder %s19, 0
    %p182 = por %p180, %p181
    %p183 = scmp.le.s32.totalorder 1, %s13
    %p184 = scmp.lt.s32.totalorder %s13, 3
    %p185 = pnand %p183, %p184
    %p186 = pneg %p185
    // Predicated region
    $region9: #{tpu_custom_call.1} parent=5 // pred_check
      _
    $region10: #{tpu_custom_call.1} parent=5 // pred_check_branch
      %188 = sbr.rel (%p185) target = $region12
    $region11: #{tpu_custom_call.1} parent=5 // pred_region
      %s189 = ssub.s32 %s13, 1
      // Predicated region
      $region13: #{tpu_custom_call.1} parent=11 // pred_check
        %p190 = pneg %p60
      $region14: #{tpu_custom_call.1} parent=11 // pred_check_branch
        %192 = sbr.rel (%p190) target = $region16
      $region15: #{tpu_custom_call.1} parent=11 // pred_region
        _
      $region16: #{tpu_custom_call.1} parent=11 // pred_fallthru
        _
      // Predicated region
      $region17: #{tpu_custom_call.1} parent=11 // pred_check
        %p193 = pneg %p81
      $region18: #{tpu_custom_call.1} parent=11 // pred_check_branch
        %195 = sbr.rel (%p193) target = $region20
      $region19: #{tpu_custom_call.1} parent=11 // pred_region
        _
      $region20: #{tpu_custom_call.1} parent=11 // pred_fallthru
        _
      // Predicated region
      $region21: #{tpu_custom_call.1} parent=11 // pred_check
        %p196 = pneg %p102
      $region22: #{tpu_custom_call.1} parent=11 // pred_check_branch
        %198 = sbr.rel (%p196) target = $region24
      $region23: #{tpu_custom_call.1} parent=11 // pred_region
        _
      $region24: #{tpu_custom_call.1} parent=11 // pred_fallthru
        _
      // Predicated region
      $region25: #{tpu_custom_call.1} parent=11 // pred_check
        %p199 = pneg %p123
      $region26: #{tpu_custom_call.1} parent=11 // pred_check_branch
        %201 = sbr.rel (%p199) target = $region28
      $region27: #{tpu_custom_call.1} parent=11 // pred_region
        _
      $region28: #{tpu_custom_call.1} parent=11 // pred_fallthru
        _
    $region12: #{tpu_custom_call.1} parent=5 // pred_fallthru
      _
    %p202 = scmp.lt.s32.totalorder %s13, 2
    // Predicated region
    $region29: #{tpu_custom_call.1} parent=5 // pred_check
      %p203 = pneg %p202
    $region30: #{tpu_custom_call.1} parent=5 // pred_check_branch
      %205 = sbr.rel (%p203) target = $region32
    $region31: #{tpu_custom_call.1} parent=5 // pred_region
      // Predicated region
      $region33: #{tpu_custom_call.1} parent=31 // pred_check
        %p206 = pneg %p33
      $region34: #{tpu_custom_call.1} parent=31 // pred_check_branch
        %208 = sbr.rel (%p206) target = $region36
      $region35: #{tpu_custom_call.1} parent=31 // pred_region
        %p209 = scmp.lt.s32.totalorder %s13, 1
        %s210 = scalar_select %p209, %s13, 1
        %s211 = smul.addr %s210, 2
        %s212 = smul.addr %s211, 8
        %s213 = scalar_lea.vmem %s0, %s212
      $region36: #{tpu_custom_call.1} parent=31 // pred_fallthru
        _
    $region32: #{tpu_custom_call.1} parent=5 // pred_fallthru
      _
    %p214 = scmp.le.s32.totalorder 1, %s13
    %p215 = scmp.lt.s32.totalorder %s13, 3
    %p216 = pnand %p214, %p215
    %p217 = pneg %p216
    // Predicated region
    $region37: #{tpu_custom_call.1} parent=5 // pred_check
      _
    $region38: #{tpu_custom_call.1} parent=5 // pred_check_branch
      %219 = sbr.rel (%p216) target = $region40
    $region39: #{tpu_custom_call.1} parent=5 // pred_region
      %s220 = ssub.s32 %s13, 1
      %p221 = scmp.lt.s32.totalorder %s18, 1
      %s222 = scalar_select %p221, %s18, 1
      %s223 = smul.addr %s222, 2
      %s224 = smul.addr %s223, 8
      %s225 = scalar_lea.vmem %s0, %s224
      %p226 = pneg %p39
      %p227 = pneg %p36
      %p228 = pneg %p60
      %p229 = pneg %p57
      %p230 = pneg %p81
      %p231 = pneg %p78
      %p232 = pneg %p102
      %p233 = pneg %p99
      %p234 = pneg %p123
      %p235 = pneg %p120
      %p236 = pneg %p149
      %p237 = pneg %p146
      %p238 = scmp.lt.s32.totalorder %s18, 1
      %s239 = scalar_select %p238, %s18, 1
      %s240 = smul.addr %s239, 2
      %s241 = smul.addr %s240, 8
      %s242 = scalar_lea.vmem %s5, %s241
      %p243 = pneg %p175
      %p244 = pneg %p172
      %p245 = scmp.lt.s32.totalorder %s18, 1
      %s246 = scalar_select %p245, %s18, 1
      %s247 = smul.addr %s246, 2
      %s248 = smul.addr %s247, 8
      %s249 = scalar_lea.vmem %s6, %s248
      %p250 = scmp.lt.s32.totalorder %s18, 1
      %s251 = scalar_select %p250, %s18, 1
      %s252 = smul.addr %s251, 2
      %s253 = smul.addr %s252, 8
      %s254 = scalar_lea.vmem %s0, %s253
      %p255 = scmp.lt.s32.totalorder %s18, 1
      %s256 = scalar_select %p255, %s18, 1
      %s257 = smul.addr %s256, 2
      %s258 = smul.addr %s257, 8
      %s259 = scalar_lea.vmem %s5, %s258
      %p260 = scmp.lt.s32.totalorder %s18, 1
      %s261 = scalar_select %p260, %s18, 1
      %s262 = smul.addr %s261, 2
      %s263 = smul.addr %s262, 8
      %s264 = scalar_lea.vmem %s6, %s263
      %v265 = vld [vmem:[%s254] sm:$0xff]
      %v266 = vld [vmem:[%s254 + $0x8] sm:$0xff]
      %v267 = vld [vmem:[%s1] sm:$0xff]
      %v268 = vld [vmem:[%s1 + $0x8] sm:$0xff]
      %v269 = vld [vmem:[%s2] sm:$0x1]
      %v271 = vperm.slane %v269, 0
      %vm273 = vcmask 130048
      %v275 = vsel %vm273, %v265, 0
      %v278 = vsel %vm273, %v266, 0
      %280 = vmatpush.msra.mxu0 0.0
      %281 = vmatpush.msra.mxu0 0.0
      %282 = vmatpush.msra.mxu0 0.0
      %283 = vmatpush.msra.mxu0 0.0
      %284 = vmatpush.msra.mxu0 0.0
      %285 = vmatpush.msra.mxu0 0.0
      %286 = vmatpush.msra.mxu0 0.0
      %287 = vmatpush.msra.mxu0 0.0
      %288 = vmatpush.msra.mxu0 0.0
      %289 = vmatpush.msra.mxu0 0.0
      %290 = vmatpush.msra.mxu0 0.0
      %291 = vmatpush.msra.mxu0 0.0
      %292 = vmatpush.msra.mxu0 0.0
      %293 = vmatpush.msra.mxu0 0.0
      %294 = vmatpush.msra.mxu0 %v268
      %295 = vmatpush.msra.mxu0 %v267
      %296 = vmatmul.f32.gmra.mxu0 %v275
      %v297 = vpop.f32.mrf.mxu0
      %v298 = vadd.f32 %v271, %v297
      %299 = vmatmul.f32.gmra.mxu0 %v278
      %v300 = vpop.f32.mrf.mxu0
      %v301 = vadd.f32 %v271, %v300
      %302 = vdwg.mxu0
      %vm303 = vcmask 64512
      %304 = vst.msk [vmem:[%s259] sm:$0xff] %vm303, %v298
      %305 = vst.msk [vmem:[%s259 + $0x8] sm:$0xff] %vm303, %v301
      %vm306 = vcmask 61440
      %307 = vst.msk [vmem:[#allocation2] sm:$0x1f] %vm306, 0.0
      %308 = vst.msk [vmem:[#allocation2 + $0x15] sm:$0x1f] %vm306, 0.0
      %309 = vst.msk [vmem:[#allocation2 + $0x5] sm:$0xff] %vm303, %v298
      %310 = vst.msk [vmem:[#allocation2 + $0xd] sm:$0xff] %vm303, %v301
      %v311 = vlaneseq
      %v312 = vshrl.u32 %v311, 7
      %v313 = vadd.s32 %v312, 8
      %vm314 = vcmp.lt.s32.totalorder %v312, 0
      %v315 = vsub.s32 0, %v312
      %v316 = vsel %vm314, %v315, %v312
      %v317 = vshrl.u32 %v316, 2
      %v318 = vand.u32 %v316, 3
      %v319 = vsub.s32 0, %v318
      %v320 = vsel %vm314, %v319, %v318
      %vm321 = vcmp.lt.s32.totalorder %v313, 0
      %v322 = vsub.s32 0, %v313
      %v323 = vsel %vm321, %v322, %v313
      %v324 = vshrl.u32 %v323, 2
      %v325 = vand.u32 %v323, 3
      %v326 = vsub.s32 0, %v325
      %v327 = vsel %vm321, %v326, %v325
      %vm328 = vcmp.ne.s32.totalorder %v320, 0
      %vm329 = vcmp.ne.s32.totalorder %v327, 0
      %vm330 = vcmp.lt.s32.totalorder %v320, 0
      %vm331 = vcmp.lt.s32.totalorder %v327, 0
      %vm332 = vmand %vm330, %vm328
      %vm333 = vmand %vm331, %vm329
      %v334 = vadd.s32 %v320, 4
      %v335 = vadd.s32 %v327, 4
      %v336 = vsel %vm332, %v334, %v320
      %v337 = vsel %vm333, %v335, %v327
      %vm338 = vcmp.ne.s32.totalorder %v336, 0
      %vm339 = vcmp.ne.s32.totalorder %v337, 0
      %vm340 = vcmp.ne.s32.totalorder %v336, 3
      %vm341 = vcmp.ne.s32.totalorder %v337, 3
      %v342 = vld [vmem:[#allocation2] sm:$0xff]
      %v343 = vld [vmem:[#allocation2 + $0x8] sm:$0xff]
      %v344 = vsel %vm338, 1, 0
      %v345 = vsel %vm339, 1, 0
      %vm346 = vcmp.eq.s32.totalorder %v344, 1
      %vm347 = vcmp.eq.s32.totalorder %v345, 1
      %v348 = vsel %vm346, %v342, 0.0
      %v349 = vsel %vm347, %v343, 0.0
      %v350 = vld [vmem:[#allocation2 + $0x1] sm:$0xff]
      %v351 = vld [vmem:[#allocation2 + $0x9] sm:$0xff]
      %v352 = vld [vmem:[#allocation2 + $0x2] sm:$0xff]
      %v353 = vld [vmem:[#allocation2 + $0xa] sm:$0xff]
      %v354 = vsel %vm340, 1, 0
      %v355 = vsel %vm341, 1, 0
      %vm356 = vcmp.eq.s32.totalorder %v354, 1
      %vm357 = vcmp.eq.s32.totalorder %v355, 1
      %v358 = vsel %vm356, %v352, 0.0
      %v359 = vsel %vm357, %v353, 0.0
      %v360 = vld [vmem:[#allocation2 + $0x4] sm:$0xff]
      %v361 = vld [vmem:[#allocation2 + $0xc] sm:$0xff]
      %v362 = vsel %vm346, %v360, 0.0
      %v363 = vsel %vm347, %v361, 0.0
      %v364 = vld [vmem:[#allocation2 + $0x5] sm:$0xff]
      %v365 = vld [vmem:[#allocation2 + $0xd] sm:$0xff]
      %v366 = vld [vmem:[#allocation2 + $0x6] sm:$0xff]
      %v367 = vld [vmem:[#allocation2 + $0xe] sm:$0xff]
      %v368 = vsel %vm356, %v366, 0.0
      %v369 = vsel %vm357, %v367, 0.0
      %v370 = vld [vmem:[#allocation2 + $0x10] sm:$0xff]
      %v371 = vsel %vm346, %v343, 0.0
      %v372 = vsel %vm347, %v370, 0.0
      %v373 = vld [vmem:[#allocation2 + $0x11] sm:$0xff]
      %v374 = vld [vmem:[#allocation2 + $0x12] sm:$0xff]
      %v375 = vsel %vm356, %v353, 0.0
      %v376 = vsel %vm357, %v374, 0.0
      %379 = vrot.lane.b32.xlu0 %v350, 8
      %v380 = vpop.permute.xlu0 %379
      %381 = vrot.lane.b32.xlu0 %v351, 8
      %v382 = vpop.permute.xlu0 %381
      %387 = vrot.lane.b32.xlu0 %v358, 16
      %v388 = vpop.permute.xlu0 %387
      %389 = vrot.lane.b32.xlu0 %v359, 16
      %v390 = vpop.permute.xlu0 %389
      %395 = vrot.lane.b32.xlu0 %v362, 24
      %v396 = vpop.permute.xlu0 %395
      %397 = vrot.lane.b32.xlu0 %v363, 24
      %v398 = vpop.permute.xlu0 %397
      %403 = vrot.lane.b32.xlu0 %v364, 32
      %v404 = vpop.permute.xlu0 %403
      %405 = vrot.lane.b32.xlu0 %v365, 32
      %v406 = vpop.permute.xlu0 %405
      %411 = vrot.lane.b32.xlu0 %v368, 40
      %v412 = vpop.permute.xlu0 %411
      %413 = vrot.lane.b32.xlu0 %v369, 40
      %v414 = vpop.permute.xlu0 %413
      %419 = vrot.lane.b32.xlu0 %v371, 48
      %v420 = vpop.permute.xlu0 %419
      %421 = vrot.lane.b32.xlu0 %v372, 48
      %v422 = vpop.permute.xlu0 %421
      %426 = vrot.lane.b32.xlu0 %v351, 56
      %v427 = vpop.permute.xlu0 %426
      %428 = vrot.lane.b32.xlu0 %v373, 56
      %v429 = vpop.permute.xlu0 %428
      %434 = vrot.lane.b32.xlu0 %v375, 64
      %v435 = vpop.permute.xlu0 %434
      %436 = vrot.lane.b32.xlu0 %v376, 64
      %v437 = vpop.permute.xlu0 %436
      %v440 = vsel %vm303, %v348, %v380
      %v441 = vsel %vm303, %v349, %v382
      %v442 = vsel %vm273, %v440, %v388
      %v443 = vsel %vm273, %v441, %v390
      %vm444 = vcmask 195584
      %v445 = vsel %vm444, %v442, %v396
      %v446 = vsel %vm444, %v443, %v398
      %vm447 = vcmask 261120
      %v448 = vsel %vm447, %v445, %v404
      %v449 = vsel %vm447, %v446, %v406
      %vm450 = vcmask 326656
      %v451 = vsel %vm450, %v448, %v412
      %v452 = vsel %vm450, %v449, %v414
      %vm453 = vcmask 392192
      %v454 = vsel %vm453, %v451, %v420
      %v455 = vsel %vm453, %v452, %v422
      %vm456 = vcmask 457728
      %v457 = vsel %vm456, %v454, %v427
      %v458 = vsel %vm456, %v455, %v429
      %vm459 = vcmask 523264
      %v460 = vsel %vm459, %v457, %v435
      %v461 = vsel %vm459, %v458, %v437
      %v462 = vld [vmem:[%s3] sm:$0xff]
      %v463 = vld [vmem:[%s3 + $0x8] sm:$0xff]
      %v464 = vld [vmem:[%s3 + $0x10] sm:$0xff]
      %v465 = vld [vmem:[%s3 + $0x18] sm:$0xff]
      %v466 = vld [vmem:[%s3 + $0x20] sm:$0xff]
      %v467 = vld [vmem:[%s3 + $0x28] sm:$0xff]
      %v468 = vld [vmem:[%s3 + $0x30] sm:$0xff]
      %v469 = vld [vmem:[%s3 + $0x38] sm:$0xff]
      %v470 = vld [vmem:[%s3 + $0x40] sm:$0xff]
      %v471 = vld [vmem:[%s4] sm:$0x1]
      %v473 = vperm.slane %v471, 0
      %vm475 = vcmask 588800
      %v477 = vsel %vm475, %v460, 0
      %v480 = vsel %vm475, %v461, 0
      %482 = vmatpush.msra.mxu0 0.0
      %483 = vmatpush.msra.mxu0 0.0
      %484 = vmatpush.msra.mxu0 0.0
      %485 = vmatpush.msra.mxu0 0.0
      %486 = vmatpush.msra.mxu0 0.0
      %487 = vmatpush.msra.mxu0 0.0
      %488 = vmatpush.msra.mxu0 0.0
      %489 = vmatpush.msra.mxu0 %v470
      %490 = vmatpush.msra.mxu0 %v469
      %491 = vmatpush.msra.mxu0 %v468
      %492 = vmatpush.msra.mxu0 %v467
      %493 = vmatpush.msra.mxu0 %v466
      %494 = vmatpush.msra.mxu0 %v465
      %495 = vmatpush.msra.mxu0 %v464
      %496 = vmatpush.msra.mxu0 %v463
      %497 = vmatpush.msra.mxu0 %v462
      %498 = vmatmul.f32.gmra.mxu0 %v477
      %v499 = vpop.f32.mrf.mxu0
      %v500 = vadd.f32 %v473, %v499
      %501 = vmatmul.f32.gmra.mxu0 %v480
      %v502 = vpop.f32.mrf.mxu0
      %v503 = vadd.f32 %v473, %v502
      %504 = vdwg.mxu0
      %505 = vst.msk [vmem:[%s264] sm:$0xff] %vm303, %v500
      %506 = vst.msk [vmem:[%s264 + $0x8] sm:$0xff] %vm303, %v503
      %p507 = scmp.lt.s32.totalorder %s18, 1
      %s508 = scalar_select %p507, %s18, 1
      %s509 = smul.addr %s508, 2
      %s510 = smul.addr %s509, 8
      %s511 = scalar_lea.vmem %s5, %s510
      %p512 = scmp.lt.s32.totalorder %s18, 1
      %s513 = scalar_select %p512, %s18, 1
      %s514 = smul.addr %s513, 2
      %s515 = smul.addr %s514, 8
      %s516 = scalar_lea.vmem %s6, %s515
      // Predicated region
      $region41: #{tpu_custom_call.1} parent=39 // pred_check
        %p517 = pneg %p146
      $region42: #{tpu_custom_call.1} parent=39 // pred_check_branch
        %519 = sbr.rel (%p517) target = $region44
      $region43: #{tpu_custom_call.1} parent=39 // pred_region
        _
      $region44: #{tpu_custom_call.1} parent=39 // pred_fallthru
        _
      // Predicated region
      $region45: #{tpu_custom_call.1} parent=39 // pred_check
        %p520 = pneg %p172
      $region46: #{tpu_custom_call.1} parent=39 // pred_check_branch
        %522 = sbr.rel (%p520) target = $region48
      $region47: #{tpu_custom_call.1} parent=39 // pred_region
        _
      $region48: #{tpu_custom_call.1} parent=39 // pred_fallthru
        _
    $region40: #{tpu_custom_call.1} parent=5 // pred_fallthru
      _
    %p523 = scmp.le.s32.totalorder 2, %s13
    // Predicated region
    $region49: #{tpu_custom_call.1} parent=5 // pred_check
      %p524 = pneg %p523
    $region50: #{tpu_custom_call.1} parent=5 // pred_check_branch
      %526 = sbr.rel (%p524) target = $region52
    $region51: #{tpu_custom_call.1} parent=5 // pred_region
      %s527 = ssub.s32 %s13, 2
      // Predicated region
      $region53: #{tpu_custom_call.1} parent=51 // pred_check
        %p528 = pneg %p152
      $region54: #{tpu_custom_call.1} parent=51 // pred_check_branch
        %530 = sbr.rel (%p528) target = $region56
      $region55: #{tpu_custom_call.1} parent=51 // pred_region
        %p531 = scmp.lt.s32.totalorder %s19, 1
        %s532 = scalar_select %p531, %s19, 1
        %s533 = smul.addr %s532, 2
        %s534 = smul.addr %s533, 8
        %s535 = scalar_lea.vmem %s5, %s534
      $region56: #{tpu_custom_call.1} parent=51 // pred_fallthru
        _
      // Predicated region
      $region57: #{tpu_custom_call.1} parent=51 // pred_check
        %p536 = pneg %p178
      $region58: #{tpu_custom_call.1} parent=51 // pred_check_branch
        %538 = sbr.rel (%p536) target = $region60
      $region59: #{tpu_custom_call.1} parent=51 // pred_region
        %p539 = scmp.lt.s32.totalorder %s19, 1
        %s540 = scalar_select %p539, %s19, 1
        %s541 = smul.addr %s540, 2
        %s542 = smul.addr %s541, 8
        %s543 = scalar_lea.vmem %s6, %s542
      $region60: #{tpu_custom_call.1} parent=51 // pred_fallthru
        _
    $region52: #{tpu_custom_call.1} parent=5 // pred_fallthru
      _
  $region6: #{tpu_custom_call.1} parent=0 // loop_footer
    %s17 = sadd.s32 1, %s13
  $region7: #{tpu_custom_call.1} parent=0 // loop_footer_branch
    %12 = sbr.rel target = $region3
  $region8: #{tpu_custom_call.1} parent=0 // loop_exit
    _

</llo_original>
